<compile_context>
chip_gen: v5e
topology: v5e:2x2
jax: 0.10.0
libtpu: 0.0.40
codegen_flags: <defaults>
</compile_context>

<pallas_src>
import math

import jax
import jax.numpy as jnp
import numpy as np
from jax.experimental import pallas as pl
from jax.experimental.pallas import tpu as pltpu


def pine_trans_conv(x, weight, bias, *, kernel_size, stride=1, dilation=1):
    """x: (N, C_in, L_in); weight: (C_in, C_out, K) (PyTorch ConvTranspose1d layout);
    bias: (C_out,). Returns (N, C_out, L_out) with the module's right-unpad applied."""
    N, Cin, Lin = x.shape
    Cout = weight.shape[1]
    K = kernel_size
    assert weight.shape == (Cin, Cout, K)

    pad = K - stride                        # unpad1d: right pad only (left pad == 0)
    assert pad >= 0, "module requires kernel_size >= stride"
    Lfull = (Lin - 1) * stride + dilation * (K - 1) + 1
    Lout = Lfull - pad

    # Residue decomposition of output position t = l*stride + k*dilation:
    #   t = (l + j_k)*stride + r_k  with  j_k = (k*dil)//stride, r_k = (k*dil)%stride.
    j_max = ((K - 1) * dilation) // stride
    Mp = Lin + j_max                        # plane positions needed per residue
    # Lane-pad the plane axis so the kernel's store lane dim (Mp_pad*N) is a
    # multiple of 128 (unmasked stores) while staying divisible by N.
    unit = 128 // math.gcd(N, 128)
    Mp_pad = ((Mp + unit - 1) // unit) * unit
    L_acc = Mp_pad * N                      # kernel output lane width
    Lx = Lin * N                            # matmul RHS lane width

    out_dtype = x.dtype

    # ---- layout glue (XLA, cheap): batch folded innermost into the lane axis ----
    x2 = jnp.transpose(x, (1, 2, 0)).reshape(Cin, Lx)               # (C_in, L_in*N)
    w2 = jnp.transpose(weight, (2, 1, 0)).reshape(K * Cout, Cin)    # (K*C_out, C_in)
    b2 = bias.reshape(Cout, 1).astype(jnp.float32)                  # (C_out, 1)

    tap_off = [((k * dilation) % stride, ((k * dilation) // stride) * N)
               for k in range(K)]

    def kernel(x_ref, w_ref, b_ref, o_ref, acc_ref):
        acc_ref[...] = jnp.zeros_like(acc_ref)
        # One MXU matmul for all K taps and all batch elements (f32 accumulate).
        p = jnp.dot(w_ref[...], x_ref[...], preferred_element_type=jnp.float32)
        # "Scatter" = K static shifted adds into the residue planes (VPU work).
        for k in range(K):
            r, off = tap_off[k]
            acc_ref[r, :, off:off + Lx] = (
                acc_ref[r, :, off:off + Lx] + p[k * Cout:(k + 1) * Cout, :])
        bvec = b_ref[...]                                            # (C_out, 1)
        for r in range(stride):
            o_ref[r] = (acc_ref[r] + bvec).astype(o_ref.dtype)

    itemsize = jnp.dtype(x.dtype).itemsize
    cost = pl.CostEstimate(
        flops=2 * K * Cout * Cin * Lx + 2 * K * Cout * Lx,
        transcendentals=0,
        bytes_accessed=(Cin * Lx + K * Cout * Cin) * itemsize
        + Cout * 4
        + stride * Cout * L_acc * jnp.dtype(out_dtype).itemsize,
    )

    # TODO(synk): for large L_in, add a "parallel" grid over tiles of the lane axis
    # (input halo of j_max*N lanes) so work shards across v7x's 2 TensorCores and
    # each tile stays within the 64 MiB VMEM budget; unnecessary at these shapes.
    planes = pl.pallas_call(
        kernel,
        out_shape=jax.ShapeDtypeStruct((stride, Cout, L_acc), out_dtype),
        in_specs=[
            pl.BlockSpec(memory_space=pltpu.MemorySpace.VMEM),
            pl.BlockSpec(memory_space=pltpu.MemorySpace.VMEM),
            pl.BlockSpec(memory_space=pltpu.MemorySpace.VMEM),
        ],
        out_specs=pl.BlockSpec(memory_space=pltpu.MemorySpace.VMEM),
        scratch_shapes=[pltpu.VMEM((stride, Cout, L_acc), jnp.float32)],
        compiler_params=pltpu.CompilerParams(vmem_limit_bytes=32 * 1024 * 1024),
        cost_estimate=cost,
    )(x2, w2, b2)

    # ---- interleave residue planes + right-unpad (cheap XLA glue) ----
    # planes[r, c, m*N + n] == output[n, c, m*stride + r]
    y = planes.reshape(stride, Cout, Mp_pad, N)
    y = jnp.transpose(y, (3, 1, 2, 0)).reshape(N, Cout, Mp_pad * stride)
    return y[:, :, :Lout]


def reference_forward(x, weight, bias, *, kernel_size, stride=1, dilation=1):
    """Pure numpy reference of ConvTranspose1d + unpad1d (PyTorch semantics)."""
    x = np.asarray(x, np.float32)
    w = np.asarray(weight, np.float32)
    b = np.asarray(bias, np.float32)
    N, Cin, Lin = x.shape
    Cout = w.shape[1]
    K = kernel_size
    Lfull = (Lin - 1) * stride + dilation * (K - 1) + 1
    y = np.zeros((N, Cout, Lfull), np.float32)
    for k in range(K):
        for l in range(Lin):
            t = l * stride + k * dilation
            y[:, :, t] += np.einsum("ni,io->no", x[:, :, l], w[:, :, k])
    y += b[None, :, None]
    pad = K - stride
    pr = int(math.ceil(pad))
    plft = pad - pr
    end = Lfull - pr
    return y[:, :, plft:end]


if __name__ == "__main__":
    # Small, deterministic problem consistent with the module's forward.
    batch, in_channels, out_channels = 2, 4, 8
    kernel_size, stride, dilation = 4, 2, 1
    L_in = 16

    key = jax.random.PRNGKey(0)
    kx, kw, kb = jax.random.split(key, 3)
    x = jax.random.normal(kx, (batch, in_channels, L_in), dtype=jnp.float32)
    # ConvTranspose1d weight shape: (in_channels, out_channels, kernel_size)
    fan = in_channels * kernel_size
    weight = jax.random.normal(kw, (in_channels, out_channels, kernel_size),
                               dtype=jnp.float32) / math.sqrt(fan)
    bias = jax.random.normal(kb, (out_channels,), dtype=jnp.float32) * 0.01

    out = pine_trans_conv(x, weight, bias,
                          kernel_size=kernel_size, stride=stride, dilation=dilation)
    out = jax.block_until_ready(out)

    ref = reference_forward(np.asarray(x), np.asarray(weight), np.asarray(bias),
                            kernel_size=kernel_size, stride=stride, dilation=dilation)
    assert out.shape == ref.shape, (out.shape, ref.shape)
    np.testing.assert_allclose(np.asarray(out), ref, rtol=1e-5, atol=1e-5)
    print("KERNEL_OK")
</pallas_src>

<mosaic_0001>
module attributes {stable_mosaic.version = 11 : i64} {
  func.func @kernel(%arg0: memref<4x32xf32, #tpu.memory_space<vmem>>, %arg1: memref<32x4xf32, #tpu.memory_space<vmem>>, %arg2: memref<8x1xf32, #tpu.memory_space<vmem>>, %arg3: memref<2x8x128xf32, #tpu.memory_space<vmem>>, %arg4: memref<2x8x128xf32, #tpu.memory_space<vmem>>) attributes {dimension_semantics = [], scalar_prefetch = 0 : i64, scratch_operands = 1 : i64, tpu.core_type = #tpu.core_type<tc>} {
    %cst = arith.constant 0.000000e+00 : f32
    %0 = vector.broadcast %cst : f32 to vector<2x8x128xf32>
    %c0 = arith.constant 0 : index
    %c0_0 = arith.constant 0 : index
    %c0_1 = arith.constant 0 : index
    %1 = vector.load %arg4[%c0, %c0_0, %c0_1] : memref<2x8x128xf32, #tpu.memory_space<vmem>>, vector<2x8x128xf32>
    tpu.vector_store %arg4[%c0, %c0_0, %c0_1], %0 {strides = array<i32>} : memref<2x8x128xf32, #tpu.memory_space<vmem>>, vector<2x8x128xf32>,
    %c0_2 = arith.constant 0 : index
    %c0_3 = arith.constant 0 : index
    %2 = vector.load %arg1[%c0_2, %c0_3] : memref<32x4xf32, #tpu.memory_space<vmem>>, vector<32x4xf32>
    %c0_4 = arith.constant 0 : index
    %c0_5 = arith.constant 0 : index
    %3 = vector.load %arg0[%c0_4, %c0_5] : memref<4x32xf32, #tpu.memory_space<vmem>>, vector<4x32xf32>
    %cst_6 = arith.constant dense<0.000000e+00> : vector<32x32xf32>
    %4 = tpu.matmul %2, %3, %cst_6 {dimension_numbers = #tpu.dot_dimension_numbers<[1], [0], [0], [1], [0, 0, 1, 1], [], []>} : vector<32x4xf32>, vector<4x32xf32>, vector<32x32xf32> -> vector<32x32xf32>
    %c0_7 = arith.constant 0 : index
    %c0_8 = arith.constant 0 : index
    %c0_9 = arith.constant 0 : index
    %5 = vector.load %arg4[%c0_7, %c0_8, %c0_9] : memref<2x8x128xf32, #tpu.memory_space<vmem>>, vector<1x8x32xf32>
    %6 = vector.shape_cast %5 : vector<1x8x32xf32> to vector<8x32xf32>
    %7 = vector.extract_strided_slice %4 {offsets = [0, 0], sizes = [8, 32], strides = [1, 1]} : vector<32x32xf32> to vector<8x32xf32>
    %8 = arith.addf %6, %7 : vector<8x32xf32>
    %c0_10 = arith.constant 0 : index
    %c0_11 = arith.constant 0 : index
    %c0_12 = arith.constant 0 : index
    %9 = vector.load %arg4[%c0_10, %c0_11, %c0_12] : memref<2x8x128xf32, #tpu.memory_space<vmem>>, vector<1x8x32xf32>
    %10 = vector.shape_cast %9 : vector<1x8x32xf32> to vector<8x32xf32>
    %11 = vector.shape_cast %8 : vector<8x32xf32> to vector<1x8x32xf32>
    tpu.vector_store %arg4[%c0_10, %c0_11, %c0_12], %11 {strides = array<i32>} : memref<2x8x128xf32, #tpu.memory_space<vmem>>, vector<1x8x32xf32>,
    %c1 = arith.constant 1 : index
    %c0_13 = arith.constant 0 : index
    %c0_14 = arith.constant 0 : index
    %12 = vector.load %arg4[%c1, %c0_13, %c0_14] : memref<2x8x128xf32, #tpu.memory_space<vmem>>, vector<1x8x32xf32>
    %13 = vector.shape_cast %12 : vector<1x8x32xf32> to vector<8x32xf32>
    %14 = vector.extract_strided_slice %4 {offsets = [8, 0], sizes = [8, 32], strides = [1, 1]} : vector<32x32xf32> to vector<8x32xf32>
    %15 = arith.addf %13, %14 : vector<8x32xf32>
    %c1_15 = arith.constant 1 : index
    %c0_16 = arith.constant 0 : index
    %c0_17 = arith.constant 0 : index
    %16 = vector.load %arg4[%c1_15, %c0_16, %c0_17] : memref<2x8x128xf32, #tpu.memory_space<vmem>>, vector<1x8x32xf32>
    %17 = vector.shape_cast %16 : vector<1x8x32xf32> to vector<8x32xf32>
    %18 = vector.shape_cast %15 : vector<8x32xf32> to vector<1x8x32xf32>
    tpu.vector_store %arg4[%c1_15, %c0_16, %c0_17], %18 {strides = array<i32>} : memref<2x8x128xf32, #tpu.memory_space<vmem>>, vector<1x8x32xf32>,
    %c0_18 = arith.constant 0 : index
    %c0_19 = arith.constant 0 : index
    %c2 = arith.constant 2 : index
    %19 = vector.load %arg4[%c0_18, %c0_19, %c2] : memref<2x8x128xf32, #tpu.memory_space<vmem>>, vector<1x8x32xf32>
    %20 = vector.shape_cast %19 : vector<1x8x32xf32> to vector<8x32xf32>
    %21 = vector.extract_strided_slice %4 {offsets = [16, 0], sizes = [8, 32], strides = [1, 1]} : vector<32x32xf32> to vector<8x32xf32>
    %22 = arith.addf %20, %21 : vector<8x32xf32>
    %c0_20 = arith.constant 0 : index
    %c0_21 = arith.constant 0 : index
    %c2_22 = arith.constant 2 : index
    %23 = vector.load %arg4[%c0_20, %c0_21, %c2_22] : memref<2x8x128xf32, #tpu.memory_space<vmem>>, vector<1x8x32xf32>
    %24 = vector.shape_cast %23 : vector<1x8x32xf32> to vector<8x32xf32>
    %25 = vector.shape_cast %22 : vector<8x32xf32> to vector<1x8x32xf32>
    tpu.vector_store %arg4[%c0_20, %c0_21, %c2_22], %25 {strides = array<i32>} : memref<2x8x128xf32, #tpu.memory_space<vmem>>, vector<1x8x32xf32>,
    %c1_23 = arith.constant 1 : index
    %c0_24 = arith.constant 0 : index
    %c2_25 = arith.constant 2 : index
    %26 = vector.load %arg4[%c1_23, %c0_24, %c2_25] : memref<2x8x128xf32, #tpu.memory_space<vmem>>, vector<1x8x32xf32>
    %27 = vector.shape_cast %26 : vector<1x8x32xf32> to vector<8x32xf32>
    %28 = vector.extract_strided_slice %4 {offsets = [24, 0], sizes = [8, 32], strides = [1, 1]} : vector<32x32xf32> to vector<8x32xf32>
    %29 = arith.addf %27, %28 : vector<8x32xf32>
    %c1_26 = arith.constant 1 : index
    %c0_27 = arith.constant 0 : index
    %c2_28 = arith.constant 2 : index
    %30 = vector.load %arg4[%c1_26, %c0_27, %c2_28] : memref<2x8x128xf32, #tpu.memory_space<vmem>>, vector<1x8x32xf32>
    %31 = vector.shape_cast %30 : vector<1x8x32xf32> to vector<8x32xf32>
    %32 = vector.shape_cast %29 : vector<8x32xf32> to vector<1x8x32xf32>
    tpu.vector_store %arg4[%c1_26, %c0_27, %c2_28], %32 {strides = array<i32>} : memref<2x8x128xf32, #tpu.memory_space<vmem>>, vector<1x8x32xf32>,
    %c0_29 = arith.constant 0 : index
    %c0_30 = arith.constant 0 : index
    %33 = vector.load %arg2[%c0_29, %c0_30] : memref<8x1xf32, #tpu.memory_space<vmem>>, vector<8x1xf32>
    %c0_31 = arith.constant 0 : index
    %c0_32 = arith.constant 0 : index
    %c0_33 = arith.constant 0 : index
    %34 = vector.load %arg4[%c0_31, %c0_32, %c0_33] : memref<2x8x128xf32, #tpu.memory_space<vmem>>, vector<1x8x128xf32>
    %35 = vector.shape_cast %34 : vector<1x8x128xf32> to vector<8x128xf32>
    %36 = vector.broadcast %33 : vector<8x1xf32> to vector<8x128xf32>
    %37 = arith.addf %35, %36 : vector<8x128xf32>
    %c0_34 = arith.constant 0 : index
    %c0_35 = arith.constant 0 : index
    %c0_36 = arith.constant 0 : index
    %38 = vector.load %arg3[%c0_34, %c0_35, %c0_36] : memref<2x8x128xf32, #tpu.memory_space<vmem>>, vector<1x8x128xf32>
    %39 = vector.shape_cast %38 : vector<1x8x128xf32> to vector<8x128xf32>
    %40 = vector.shape_cast %37 : vector<8x128xf32> to vector<1x8x128xf32>
    tpu.vector_store %arg3[%c0_34, %c0_35, %c0_36], %40 {strides = array<i32>} : memref<2x8x128xf32, #tpu.memory_space<vmem>>, vector<1x8x128xf32>,
    %c1_37 = arith.constant 1 : index
    %c0_38 = arith.constant 0 : index
    %c0_39 = arith.constant 0 : index
    %41 = vector.load %arg4[%c1_37, %c0_38, %c0_39] : memref<2x8x128xf32, #tpu.memory_space<vmem>>, vector<1x8x128xf32>
    %42 = vector.shape_cast %41 : vector<1x8x128xf32> to vector<8x128xf32>
    %43 = vector.broadcast %33 : vector<8x1xf32> to vector<8x128xf32>
    %44 = arith.addf %42, %43 : vector<8x128xf32>
    %c1_40 = arith.constant 1 : index
    %c0_41 = arith.constant 0 : index
    %c0_42 = arith.constant 0 : index
    %45 = vector.load %arg3[%c1_40, %c0_41, %c0_42] : memref<2x8x128xf32, #tpu.memory_space<vmem>>, vector<1x8x128xf32>
    %46 = vector.shape_cast %45 : vector<1x8x128xf32> to vector<8x128xf32>
    %47 = vector.shape_cast %44 : vector<8x128xf32> to vector<1x8x128xf32>
    tpu.vector_store %arg3[%c1_40, %c0_41, %c0_42], %47 {strides = array<i32>} : memref<2x8x128xf32, #tpu.memory_space<vmem>>, vector<1x8x128xf32>,
    return
  }
}

</mosaic_0001>

<llo_original>
// kernel: tpu_custom_call.1
$region0: #{tpu_custom_call.1}
  #allocation0 [shape = 'u32[]', space=smem, size = 0x4, offset = 0x4, fixed_abs, tag = 'smem constant byte address 0x4 - core index']
  #allocation1 [shape = 'u32[72,128]{1,0:T(1,128)}', space=vmem, size = 0x9000, scoped, tag = 'internal scratch']
  #allocation2 [shape = 'f32[2,8,128]{2,1,0:T(8,128)}', space=vmem, size = 0x2000, scoped, tag = 'scratch operand']
  %s0 = inlined_call_operand.vmem [shape: f32[4,32], index: 0, kind: input, shape index: {}]
  %s1 = inlined_call_operand.vmem [shape: f32[32,4], index: 1, kind: input, shape index: {}]
  %s2 = inlined_call_operand.vmem [shape: f32[8,1], index: 2, kind: input, shape index: {}]
  %s3 = inlined_call_operand.hbm [shape: f32[2,8,128], index: 3, kind: output, shape index: {}]
  %s4 = sld [smem:[#allocation0]]
  $region22: #{tpu_custom_call.1} parent=0
    _
  %s6 = ssub.s32 1, %s4
  %s7 = scalar_select 0, %s6, %s4
  $region1: #{tpu_custom_call.1} parent=0
    #allocation3 [shape = 'u8[8192]{0}', space=vmem, size = 0x2000, scoped, tag = 'output window, operand 0, single buffered']
    #allocation4 [shape = 's32[1]{0}', space=sflag, size = 0x4, scoped, tag = 'scoped memory for tpu_custom_call.1']
    %8 = vsyncpa [#allocation4], 0
    // Predicated region
    $region2: #{tpu_custom_call.1} parent=1 // pred_check
      _
    $region3: #{tpu_custom_call.1} parent=1 // pred_check_branch
      %10 = sbr.rel (0) target = $region5
    $region4: #{tpu_custom_call.1} parent=1 // pred_region
      _
    $region5: #{tpu_custom_call.1} parent=1 // pred_fallthru
      _
    // Predicated region
    $region6: #{tpu_custom_call.1} parent=1 // pred_check
      _
    $region7: #{tpu_custom_call.1} parent=1 // pred_check_branch
      %12 = sbr.rel (0) target = $region9
    $region8: #{tpu_custom_call.1} parent=1 // pred_region
      _
    $region9: #{tpu_custom_call.1} parent=1 // pred_fallthru
      _
    // Predicated region
    $region10: #{tpu_custom_call.1} parent=1 // pred_check
      _
    $region11: #{tpu_custom_call.1} parent=1 // pred_check_branch
      %14 = sbr.rel (0) target = $region13
    $region12: #{tpu_custom_call.1} parent=1 // pred_region
      _
    $region13: #{tpu_custom_call.1} parent=1 // pred_fallthru
      _
    %15 = vst [vmem:[#allocation2] sm:$0xff] 0.0
    %16 = vst [vmem:[#allocation2 + $0x8] sm:$0xff] 0.0
    %v17 = vld [vmem:[%s1] sm:$0xff]
    %v18 = vld [vmem:[%s1 + $0x8] sm:$0xff]
    %v19 = vld [vmem:[%s1 + $0x10] sm:$0xff]
    %v20 = vld [vmem:[%s1 + $0x18] sm:$0xff]
    %v21 = vld [vmem:[%s0] sm:$0xf]
    %vm22 = vcmask 31744
    %v24 = vsel %vm22, %v17, 0
    %v27 = vsel %vm22, %v18, 0
    %v30 = vsel %vm22, %v19, 0
    %v33 = vsel %vm22, %v20, 0
    %vm35 = vcmask 1043456
    %v37 = vsel %vm35, %v21, 0
    %39 = vmatpush.msra.mxu0 0.0
    %40 = vmatpush.msra.mxu0 0.0
    %41 = vmatpush.msra.mxu0 0.0
    %42 = vmatpush.msra.mxu0 0.0
    %43 = vmatpush.msra.mxu0 0.0
    %44 = vmatpush.msra.mxu0 0.0
    %45 = vmatpush.msra.mxu0 0.0
    %46 = vmatpush.msra.mxu0 0.0
    %47 = vmatpush.msra.mxu0 0.0
    %48 = vmatpush.msra.mxu0 0.0
    %49 = vmatpush.msra.mxu0 0.0
    %50 = vmatpush.msra.mxu0 0.0
    %51 = vmatpush.msra.mxu0 0.0
    %52 = vmatpush.msra.mxu0 0.0
    %53 = vmatpush.msra.mxu0 0.0
    %54 = vmatpush.msra.mxu0 %v37
    %55 = vmatmul.f32.gmra.mxu0 %v24
    %v56 = vpop.f32.mrf.mxu0
    %v57 = vadd.f32 0.0, %v56
    %58 = vmatmul.f32.gmra.mxu0 %v27
    %v59 = vpop.f32.mrf.mxu0
    %v60 = vadd.f32 0.0, %v59
    %61 = vmatmul.f32.gmra.mxu0 %v30
    %v62 = vpop.f32.mrf.mxu0
    %v63 = vadd.f32 0.0, %v62
    %64 = vmatmul.f32.gmra.mxu0 %v33
    %v65 = vpop.f32.mrf.mxu0
    %v66 = vadd.f32 0.0, %v65
    %67 = vdwg.mxu0
    %v68 = vld [vmem:[#allocation2] sm:$0xff]
    %v69 = vadd.f32 %v68, %v57
    %vm70 = vcmask 261120
    %71 = vst.msk [vmem:[#allocation2] sm:$0xff] %vm70, %v69
    %s72 = scalar_lea.vmem [#allocation2], 8
    %v73 = vld [vmem:[%s72] sm:$0xff]
    %v74 = vadd.f32 %v73, %v60
    %75 = vst.msk [vmem:[%s72] sm:$0xff] %vm70, %v74
    %v76 = vld [vmem:[#allocation2] sm:$0xff]
    %78 = vrot.lane.b32.xlu0 %v63, 2
    %v79 = vpop.permute.xlu0 %78
    %v81 = vadd.f32 %v76, %v79
    %vm82 = vcmask 277520
    %83 = vst.msk [vmem:[#allocation2] sm:$0xff] %vm82, %v81
    %v84 = vld [vmem:[%s72] sm:$0xff]
    %86 = vrot.lane.b32.xlu0 %v66, 2
    %v87 = vpop.permute.xlu0 %86
    %v89 = vadd.f32 %v84, %v87
    %90 = vst.msk [vmem:[%s72] sm:$0xff] %vm82, %v89
    %v91 = vld [vmem:[%s2] sm:$0xff]
    %v92 = vld [vmem:[#allocation2] sm:$0xff]
    %94 = vset.pattern.permute.xlu0 0
    %95 = vperm.xlu0 %94, %v91
    %v96 = vpop.permute.xlu0 %95
    %v98 = vadd.f32 %v92, %v96
    %99 = vst [vmem:[#allocation3] sm:$0xff] %v98
    %v100 = vld [vmem:[%s72] sm:$0xff]
    %v101 = vadd.f32 %v100, %v96
    %s102 = scalar_lea.vmem [#allocation3], 8
    %103 = vst [vmem:[%s102] sm:$0xff] %v101
    // Predicated region
    $region14: #{tpu_custom_call.1} parent=1 // pred_check
      _
    $region15: #{tpu_custom_call.1} parent=1 // pred_check_branch
      %105 = sbr.rel (0) target = $region17
    $region16: #{tpu_custom_call.1} parent=1 // pred_region
      %107 = vsyncadd [#allocation4], 0
      %s108 = sshll.u32 [#allocation3], 4
      %s109 = int_to_ptr.vmem [resolvable:$true] %s108
      %s110 = sshll.u32 %s3, 4
      %s111 = int_to_ptr.hbm [resolvable:$true] %s110
      %116 = dma.vmem_to_hbm [thread:$0]  %s109, 256, %s111, [#allocation4], 128, 128, 8
    $region17: #{tpu_custom_call.1} parent=1 // pred_fallthru
      _
    // Predicated region
    $region18: #{tpu_custom_call.1} parent=1 // pred_check
      _
    $region19: #{tpu_custom_call.1} parent=1 // pred_check_branch
      %118 = sbr.rel (0) target = $region21
    $region20: #{tpu_custom_call.1} parent=1 // pred_region
      %120 = dma.done [#allocation4], 256
    $region21: #{tpu_custom_call.1} parent=1 // pred_fallthru
      _
    %121 = vsyncpa [#allocation4], 1

</llo_original>
